<compile_context>
chip_gen: v6e
topology: v6e:2x2x1
jax: 0.10.0
libtpu: 0.0.40
codegen_flags: <defaults>
</compile_context>

<pallas_src>
import jax
import jax.numpy as jnp
from jax import lax
from jax.experimental import pallas as pl
from jax.experimental.pallas import tpu as pltpu

_LANES = 128
_SUBLANES = 8
_SMALL_FALLBACK_ELEMS = 64 * 1024   # below this a single fused XLA reduction wins


def location_loss_ref(pred_location, gt_location, w=192.0, h=192.0):
    """Plain-JAX reference mirroring the PyTorch module (choice='l2')."""
    img_size = jnp.array([w, h], dtype=jnp.float32)
    gt_norm = gt_location.astype(jnp.float32) / (0.5 * img_size) - 1.0
    return jnp.mean((pred_location.astype(jnp.float32) - gt_norm) ** 2)


def _make_kernel(inv_w, inv_h, rows, tr, inner):
    """Kernel with static reciprocals / row count / tile size folded in."""
    inv_w = float(inv_w)
    inv_h = float(inv_h)

    def kernel(pred_ref, gt_ref, out_ref):
        # pred_ref, gt_ref : (tr, 128) f32/bf16 VMEM tiles
        # out_ref          : (8, 128)  f32 VMEM partial-sum block (resident across inner axis)
        c = pl.program_id(0)   # core split ("parallel")
        k = pl.program_id(1)   # row-tile reduction ("arbitrary")

        @pl.when(k == 0)
        def _():
            out_ref[...] = jnp.zeros_like(out_ref)

        # Alternating (2/w, 2/h) per lane — xy stays interleaved and _LANES is even,
        # so lane parity == element parity. Built in-kernel: no extra input stream.
        lane = lax.broadcasted_iota(jnp.int32, (1, _LANES), 1)
        inv = jnp.where(lane % 2 == 0, jnp.float32(inv_w), jnp.float32(inv_h))

        pred = pred_ref[...].astype(jnp.float32)
        gt_norm = gt_ref[...].astype(jnp.float32) * inv - 1.0
        d = pred - gt_norm
        sq = d * d

        # Mask rows past the true row count (partial last tile / clamped duplicate tiles).
        base = (c * inner + k) * tr
        row = lax.broadcasted_iota(jnp.int32, (tr, _LANES), 0)
        sq = jnp.where(row < (rows - base), sq, 0.0)

        # Fold (tr,128) -> (8,128): pure VPU adds, hides under the DMA.
        out_ref[...] += jnp.sum(sq.reshape(tr // _SUBLANES, _SUBLANES, _LANES), axis=0)

    return kernel


def location_loss(pred_location, gt_location, w=192.0, h=192.0,
                  tile_rows=2048, n_split=2):
    """Pallas implementation of LocationLoss(choice='l2').forward."""
    assert pred_location.shape == gt_location.shape
    assert pred_location.shape[-1] == 2, "last dim must be (x, y)"
    assert _LANES % 2 == 0  # keeps per-lane x/y parity consistent per row
    tile_rows = int(tile_rows)
    assert tile_rows >= _SUBLANES and tile_rows % _SUBLANES == 0
    tile_rows = min(tile_rows, 16384)   # stay inside default scoped VMEM on all generations

    total = int(pred_location.size)     # B * N * 2 true elements
    if total < _SMALL_FALLBACK_ELEMS:
        # A single fused XLA reduction beats the pallas_call launch at this size.
        return location_loss_ref(pred_location, gt_location, w, h)

    # ---- lane-dense flatten; pad only to the 8x128 boundary (free reshape if aligned) ----
    rows = -(-total // (_SUBLANES * _LANES)) * _SUBLANES   # ceil to multiple of 8 sublanes
    padded = rows * _LANES
    tr = min(tile_rows, rows)
    nblocks = -(-rows // tr)                               # cdiv; last block may be partial
    nsp = max(1, min(int(n_split), nblocks))               # 2-way split (v7x dual TC)
    inner = -(-nblocks // nsp)

    def _prep(x, pad_value):
        # bf16/f32 stream as-is (no wrapper upcast); anything else goes to f32.
        if x.dtype not in (jnp.bfloat16, jnp.float32):
            x = x.astype(jnp.float32)
        flat = x.reshape(-1)
        if padded != total:
            # <=1023-element residue: pred=-1 / gt=0  =>  -1 - (0*inv - 1) = 0 contribution.
            flat = jnp.pad(flat, (0, padded - total), constant_values=pad_value)
        return flat.reshape(rows, _LANES)

    pred_f = _prep(pred_location, -1.0)
    gt_f = _prep(gt_location, 0.0)

    def in_map(c, k):
        # Clamp so the block index never leaves the array; the duplicated tail tile is
        # fully masked in-kernel.
        return (jnp.minimum(c * inner + k, nblocks - 1), 0)

    partials = pl.pallas_call(
        _make_kernel(2.0 / w, 2.0 / h, rows, tr, inner),
        out_shape=jax.ShapeDtypeStruct((nsp, _SUBLANES, _LANES), jnp.float32),
        grid=(nsp, inner),
        in_specs=[
            pl.BlockSpec((tr, _LANES), in_map),
            pl.BlockSpec((tr, _LANES), in_map),
        ],
        out_specs=pl.BlockSpec((None, _SUBLANES, _LANES), lambda c, k: (c, 0, 0)),
        compiler_params=pltpu.CompilerParams(
            dimension_semantics=("parallel", "arbitrary")),
    )(pred_f, gt_f)

    # Single cross-lane collapse + mean over the TRUE element count.
    return jnp.sum(partials) * jnp.float32(1.0 / total)


if __name__ == "__main__":
    key = jax.random.PRNGKey(0)
    k1, k2, k3, k4, k5, k6 = jax.random.split(key, 6)
    W = H = 192.0

    # 1) tiny case matching the module's typical use (B=2 batches, 8 waypoints of (x, y))
    B, N = 2, 8
    pred = jax.random.uniform(k1, (B, N, 2), jnp.float32, -1.0, 1.0)
    gt = jax.random.uniform(k2, (B, N, 2), jnp.float32, 0.0, W)
    out = jax.block_until_ready(location_loss(pred, gt, W, H))
    ref = jax.block_until_ready(location_loss_ref(pred, gt, W, H))
    assert jnp.allclose(out, ref, rtol=1e-5, atol=1e-5), (out, ref)

    # 2) single-tile kernel path (total % 1024 == 0 -> no wrapper pad at all)
    B2, N2 = 8, 4096   # 65536 elements
    pred2 = jax.random.uniform(k3, (B2, N2, 2), jnp.float32, -1.0, 1.0)
    gt2 = jax.random.uniform(k4, (B2, N2, 2), jnp.float32, 0.0, W)
    out2 = jax.block_until_ready(location_loss(pred2, gt2, W, H))
    ref2 = jax.block_until_ready(location_loss_ref(pred2, gt2, W, H))
    assert jnp.allclose(out2, ref2, rtol=1e-5, atol=1e-5), (out2, ref2)

    # 3) 2-way split, partial last tile + sub-1024 residue pad, bf16 input streams
    B3, N3 = 8, 20000  # 320000 elements -> 2504 rows -> 2 tiles of 2048 (last one partial)
    pred3 = jax.random.uniform(k5, (B3, N3, 2), jnp.float32, -1.0, 1.0).astype(jnp.bfloat16)
    gt3 = jax.random.uniform(k6, (B3, N3, 2), jnp.float32, 0.0, W).astype(jnp.bfloat16)
    out3 = jax.block_until_ready(location_loss(pred3, gt3, W, H))
    ref3 = jax.block_until_ready(location_loss_ref(pred3, gt3, W, H))
    assert jnp.allclose(out3, ref3, rtol=1e-4, atol=1e-4), (out3, ref3)

    print("KERNEL_OK")
</pallas_src>

<mosaic_0001>
module attributes {stable_mosaic.version = 11 : i64} {
  func.func @kernel(%arg0: i32, %arg1: i32, %arg2: memref<512x128xf32, #tpu.memory_space<vmem>>, %arg3: memref<512x128xf32, #tpu.memory_space<vmem>>, %arg4: memref<1x8x128xf32, #tpu.memory_space<vmem>>) attributes {dimension_semantics = [#tpu.dimension_semantics<parallel>, #tpu.dimension_semantics<arbitrary>], iteration_bounds = array<i64: 1, 1>, scalar_prefetch = 0 : i64, scratch_operands = 0 : i64, tpu.core_type = #tpu.core_type<tc>, window_params = [{transform_indices = @transform_0, window_bounds = array<i64: 512, 128>}, {transform_indices = @transform_1, window_bounds = array<i64: 512, 128>}, {transform_indices = @transform_2, window_bounds = array<i64: 1, 8, 128>}]} {
    %c0_i32 = arith.constant 0 : i32
    %0 = arith.cmpi eq, %arg1, %c0_i32 : i32
    %1 = arith.extui %0 : i1 to i32
    %c0_i32_0 = arith.constant 0 : i32
    %2 = arith.cmpi ne, %1, %c0_i32_0 : i32
    scf.if %2 {
      %cst_21 = arith.constant 0.000000e+00 : f32
      %50 = vector.broadcast %cst_21 : f32 to vector<8x128xf32>
      %c0_22 = arith.constant 0 : index
      %c0_23 = arith.constant 0 : index
      %c0_24 = arith.constant 0 : index
      %51 = vector.load %arg4[%c0_22, %c0_23, %c0_24] : memref<1x8x128xf32, #tpu.memory_space<vmem>>, vector<1x8x128xf32>
      %52 = vector.shape_cast %51 : vector<1x8x128xf32> to vector<8x128xf32>
      %53 = vector.shape_cast %50 : vector<8x128xf32> to vector<1x8x128xf32>
      tpu.vector_store %arg4[%c0_22, %c0_23, %c0_24], %53 {strides = array<i32>} : memref<1x8x128xf32, #tpu.memory_space<vmem>>, vector<1x8x128xf32>,
    } else {
    }
    %3 = tpu.iota {dimensions = array<i32: 1>} : vector<1x128xi32>
    %c2_i32 = arith.constant 2 : i32
    %c0_i32_1 = arith.constant 0 : i32
    %4 = arith.cmpi eq, %c2_i32, %c0_i32_1 : i32
    %c1_i32 = arith.constant 1 : i32
    %5 = arith.select %4, %c1_i32, %c2_i32 : i32
    %6 = vector.broadcast %5 : i32 to vector<1x128xi32>
    %7 = arith.remsi %3, %6 : vector<1x128xi32>
    %c0_i32_2 = arith.constant 0 : i32
    %8 = vector.broadcast %c0_i32_2 : i32 to vector<1x128xi32>
    %9 = arith.cmpi ne, %7, %8 : vector<1x128xi32>
    %c0_i32_3 = arith.constant 0 : i32
    %10 = vector.broadcast %c0_i32_3 : i32 to vector<1x128xi32>
    %11 = arith.cmpi slt, %7, %10 : vector<1x128xi32>
    %c0_i32_4 = arith.constant 0 : i32
    %12 = arith.cmpi slt, %5, %c0_i32_4 : i32
    %13 = vector.broadcast %12 : i1 to vector<1x128xi1>
    %14 = vector.broadcast %13 : vector<1x128xi1> to vector<1x128xi1>
    %15 = arith.xori %11, %14 : vector<1x128xi1>
    %16 = arith.andi %15, %9 : vector<1x128xi1>
    %17 = vector.broadcast %5 : i32 to vector<1x128xi32>
    %18 = arith.addi %7, %17 : vector<1x128xi32>
    %19 = arith.select %16, %18, %7 : vector<1x128xi1>, vector<1x128xi32>
    %c0_i32_5 = arith.constant 0 : i32
    %20 = vector.broadcast %c0_i32_5 : i32 to vector<1x128xi32>
    %21 = arith.cmpi eq, %19, %20 : vector<1x128xi32>
    %cst = arith.constant 0.010416667 : f32
    %cst_6 = arith.constant 0.010416667 : f32
    %22 = vector.broadcast %cst : f32 to vector<1x128xf32>
    %23 = vector.broadcast %cst_6 : f32 to vector<1x128xf32>
    %24 = arith.select %21, %22, %23 : vector<1x128xi1>, vector<1x128xf32>
    %c0 = arith.constant 0 : index
    %c0_7 = arith.constant 0 : index
    %25 = vector.load %arg2[%c0, %c0_7] : memref<512x128xf32, #tpu.memory_space<vmem>>, vector<512x128xf32>
    %c0_8 = arith.constant 0 : index
    %c0_9 = arith.constant 0 : index
    %26 = vector.load %arg3[%c0_8, %c0_9] : memref<512x128xf32, #tpu.memory_space<vmem>>, vector<512x128xf32>
    %27 = vector.broadcast %24 : vector<1x128xf32> to vector<512x128xf32>
    %28 = arith.mulf %26, %27 : vector<512x128xf32>
    %cst_10 = arith.constant 1.000000e+00 : f32
    %29 = vector.broadcast %cst_10 : f32 to vector<512x128xf32>
    %30 = arith.subf %28, %29 : vector<512x128xf32>
    %31 = arith.subf %25, %30 : vector<512x128xf32>
    %32 = arith.mulf %31, %31 : vector<512x128xf32>
    %c1_i32_11 = arith.constant 1 : i32
    %33 = arith.muli %arg0, %c1_i32_11 : i32
    %34 = arith.addi %33, %arg1 : i32
    %c512_i32 = arith.constant 512 : i32
    %35 = arith.muli %34, %c512_i32 : i32
    %36 = tpu.iota {dimensions = array<i32: 0>} : vector<512x128xi32>
    %c512_i32_12 = arith.constant 512 : i32
    %37 = arith.subi %c512_i32_12, %35 : i32
    %38 = vector.broadcast %37 : i32 to vector<512x128xi32>
    %39 = arith.cmpi slt, %36, %38 : vector<512x128xi32>
    %cst_13 = arith.constant 0.000000e+00 : f32
    %40 = vector.broadcast %cst_13 : f32 to vector<512x128xf32>
    %41 = arith.select %39, %32, %40 : vector<512x128xi1>, vector<512x128xf32>
    %c0_14 = arith.constant 0 : index
    %c0_15 = arith.constant 0 : index
    %c0_16 = arith.constant 0 : index
    %42 = vector.load %arg4[%c0_14, %c0_15, %c0_16] : memref<1x8x128xf32, #tpu.memory_space<vmem>>, vector<1x8x128xf32>
    %43 = vector.shape_cast %42 : vector<1x8x128xf32> to vector<8x128xf32>
    %44 = vector.shape_cast %41 : vector<512x128xf32> to vector<64x8x128xf32>
    %cst_17 = arith.constant dense<0.000000e+00> : vector<8x128xf32>
    %45 = vector.multi_reduction <add>, %44, %cst_17 [0] : vector<64x8x128xf32> to vector<8x128xf32>
    %46 = arith.addf %43, %45 : vector<8x128xf32>
    %c0_18 = arith.constant 0 : index
    %c0_19 = arith.constant 0 : index
    %c0_20 = arith.constant 0 : index
    %47 = vector.load %arg4[%c0_18, %c0_19, %c0_20] : memref<1x8x128xf32, #tpu.memory_space<vmem>>, vector<1x8x128xf32>
    %48 = vector.shape_cast %47 : vector<1x8x128xf32> to vector<8x128xf32>
    %49 = vector.shape_cast %46 : vector<8x128xf32> to vector<1x8x128xf32>
    tpu.vector_store %arg4[%c0_18, %c0_19, %c0_20], %49 {strides = array<i32>} : memref<1x8x128xf32, #tpu.memory_space<vmem>>, vector<1x8x128xf32>,
    return
  }
  func.func @transform_0(%arg0: i32, %arg1: i32) -> (i32, i32) {
    %c1_i32 = arith.constant 1 : i32
    %0 = arith.muli %arg0, %c1_i32 : i32
    %1 = arith.addi %0, %arg1 : i32
    %c0_i32 = arith.constant 0 : i32
    %2 = arith.minsi %1, %c0_i32 : i32
    %c0_i32_0 = arith.constant 0 : i32
    %c0_i32_1 = arith.constant 0 : i32
    return %2, %c0_i32_0 : i32, i32
  }
  func.func @transform_1(%arg0: i32, %arg1: i32) -> (i32, i32) {
    %c1_i32 = arith.constant 1 : i32
    %0 = arith.muli %arg0, %c1_i32 : i32
    %1 = arith.addi %0, %arg1 : i32
    %c0_i32 = arith.constant 0 : i32
    %2 = arith.minsi %1, %c0_i32 : i32
    %c0_i32_0 = arith.constant 0 : i32
    %c0_i32_1 = arith.constant 0 : i32
    return %2, %c0_i32_0 : i32, i32
  }
  func.func @transform_2(%arg0: i32, %arg1: i32) -> (i32, i32, i32) {
    %c0_i32 = arith.constant 0 : i32
    %c0_i32_0 = arith.constant 0 : i32
    %c0_i32_1 = arith.constant 0 : i32
    return %arg0, %c0_i32, %c0_i32_0 : i32, i32, i32
  }
}

</mosaic_0001>

<llo_original>
// kernel: tpu_custom_call.1
$region0: #{tpu_custom_call.1}
  #allocation0 [shape = 'u32[]', space=smem, size = 0x4, offset = 0x4, fixed_abs, tag = 'smem constant byte address 0x4 - core index']
  #allocation1 [shape = 'u32[144,128]{1,0:T(1,128)}', space=vmem, size = 0x12000, scoped, tag = 'internal scratch']
  %s0 = inlined_call_operand.hbm [shape: f32[512,128], index: 0, kind: input, shape index: {}]
  %s1 = inlined_call_operand.hbm [shape: f32[512,128], index: 1, kind: input, shape index: {}]
  %s2 = inlined_call_operand.hbm [shape: f32[1,8,128], index: 2, kind: output, shape index: {}]
  %s3 = sld [smem:[#allocation0]]
  $region30: #{tpu_custom_call.1} parent=0
    _
  %s5 = ssub.s32 1, %s3
  %s6 = scalar_select 0, %s5, %s3
  $region1: #{tpu_custom_call.1} parent=0
    #allocation2 [shape = 'u8[262144]{0}', space=vmem, size = 0x40000, scoped, tag = 'input window, operand 0, single buffered']
    #allocation3 [shape = 's32[1]{0}', space=sflag, size = 0x4, scoped, tag = 'scoped memory for tpu_custom_call.1']
    #allocation4 [shape = 's32[1]{0}', space=sflag, size = 0x4, scoped, tag = 'scoped memory for tpu_custom_call.1']
    #allocation5 [shape = 'u8[262144]{0}', space=vmem, size = 0x40000, scoped, tag = 'input window, operand 1, single buffered']
    #allocation6 [shape = 's32[1]{0}', space=sflag, size = 0x4, scoped, tag = 'scoped memory for tpu_custom_call.1']
    #allocation7 [shape = 'u8[4096]{0}', space=vmem, size = 0x1000, scoped, tag = 'output window, operand 0, single buffered']
    %7 = vsyncpa [#allocation3], 0
    %8 = vsyncpa [#allocation6], 0
    %9 = vsyncpa [#allocation4], 0
    // Predicated region
    $region2: #{tpu_custom_call.1} parent=1 // pred_check
      _
    $region3: #{tpu_custom_call.1} parent=1 // pred_check_branch
      %11 = sbr.rel (0) target = $region5
    $region4: #{tpu_custom_call.1} parent=1 // pred_region
      %s12 = sadd.s32 0, 0
      %p13 = scmp.lt.s32.totalorder %s12, 0
      %s14 = scalar_select %p13, %s12, 0
      %s15 = smul.u32 64, %s14
      %s17 = ssub.s32 8192, 8192
      %18 = vsyncadd [#allocation3], %s17
      %s19 = smul.addr %s15, 128
      %s20 = scalar_lea.hbm %s0, %s19
      %s21 = sshll.u32 [#allocation2], 4
      %s22 = int_to_ptr.vmem [resolvable:$true] %s21
      %27 = dma.hbm_to_vmem [thread:$0]  %s20, 8192, %s22, [#allocation3], 128, 128, 8
    $region5: #{tpu_custom_call.1} parent=1 // pred_fallthru
      _
    // Predicated region
    $region6: #{tpu_custom_call.1} parent=1 // pred_check
      _
    $region7: #{tpu_custom_call.1} parent=1 // pred_check_branch
      %29 = sbr.rel (0) target = $region9
    $region8: #{tpu_custom_call.1} parent=1 // pred_region
      %s30 = sadd.s32 0, 0
      %p31 = scmp.lt.s32.totalorder %s30, 0
      %s32 = scalar_select %p31, %s30, 0
      %s33 = smul.u32 64, %s32
      %s35 = ssub.s32 8192, 8192
      %36 = vsyncadd [#allocation6], %s35
      %s37 = smul.addr %s33, 128
      %s38 = scalar_lea.hbm %s1, %s37
      %s39 = sshll.u32 [#allocation5], 4
      %s40 = int_to_ptr.vmem [resolvable:$true] %s39
      %45 = dma.hbm_to_vmem [thread:$0]  %s38, 8192, %s40, [#allocation6], 128, 128, 8
    $region9: #{tpu_custom_call.1} parent=1 // pred_fallthru
      _
    // Predicated region
    $region10: #{tpu_custom_call.1} parent=1 // pred_check
      _
    $region11: #{tpu_custom_call.1} parent=1 // pred_check_branch
      %47 = sbr.rel (0) target = $region13
    $region12: #{tpu_custom_call.1} parent=1 // pred_region
      %48 = dma.done [#allocation3], 8192
    $region13: #{tpu_custom_call.1} parent=1 // pred_fallthru
      _
    // Predicated region
    $region14: #{tpu_custom_call.1} parent=1 // pred_check
      _
    $region15: #{tpu_custom_call.1} parent=1 // pred_check_branch
      %50 = sbr.rel (0) target = $region17
    $region16: #{tpu_custom_call.1} parent=1 // pred_region
      %51 = dma.done [#allocation6], 8192
    $region17: #{tpu_custom_call.1} parent=1 // pred_fallthru
      _
    %s52 = sadd.s32 0, 0
    %p53 = scmp.lt.s32.totalorder %s52, 0
    %s54 = scalar_select %p53, %s52, 0
    %s55 = smul.u32 64, %s54
    %s56 = sadd.s32 0, 0
    %p57 = scmp.lt.s32.totalorder %s56, 0
    %s58 = scalar_select %p57, %s56, 0
    %s59 = smul.u32 64, %s58
    %p60 = scmp.eq.s32.totalorder 0, 0
    // Predicated region
    $region18: #{tpu_custom_call.1} parent=1 // pred_check
      %p61 = pneg %p60
    $region19: #{tpu_custom_call.1} parent=1 // pred_check_branch
      %63 = sbr.rel (%p61) target = $region21
    $region20: #{tpu_custom_call.1} parent=1 // pred_region
      %64 = vst [vmem:[#allocation7] sm:$0xff] 0.0
    $region21: #{tpu_custom_call.1} parent=1 // pred_fallthru
      _
    %v65 = vld [vmem:[#allocation2] sm:$0xff]
    %v66 = vld [vmem:[#allocation2 + $0x8] sm:$0xff]
    %v67 = vld [vmem:[#allocation2 + $0x10] sm:$0xff]
    %v68 = vld [vmem:[#allocation2 + $0x18] sm:$0xff]
    %v69 = vld [vmem:[#allocation2 + $0x20] sm:$0xff]
    %v70 = vld [vmem:[#allocation2 + $0x28] sm:$0xff]
    %v71 = vld [vmem:[#allocation2 + $0x30] sm:$0xff]
    %v72 = vld [vmem:[#allocation2 + $0x38] sm:$0xff]
    %v73 = vld [vmem:[#allocation2 + $0x40] sm:$0xff]
    %v74 = vld [vmem:[#allocation2 + $0x48] sm:$0xff]
    %v75 = vld [vmem:[#allocation2 + $0x50] sm:$0xff]
    %v76 = vld [vmem:[#allocation2 + $0x58] sm:$0xff]
    %v77 = vld [vmem:[#allocation2 + $0x60] sm:$0xff]
    %v78 = vld [vmem:[#allocation2 + $0x68] sm:$0xff]
    %v79 = vld [vmem:[#allocation2 + $0x70] sm:$0xff]
    %v80 = vld [vmem:[#allocation2 + $0x78] sm:$0xff]
    %v81 = vld [vmem:[#allocation2 + $0x80] sm:$0xff]
    %v82 = vld [vmem:[#allocation2 + $0x88] sm:$0xff]
    %v83 = vld [vmem:[#allocation2 + $0x90] sm:$0xff]
    %v84 = vld [vmem:[#allocation2 + $0x98] sm:$0xff]
    %v85 = vld [vmem:[#allocation2 + $0xa0] sm:$0xff]
    %v86 = vld [vmem:[#allocation2 + $0xa8] sm:$0xff]
    %v87 = vld [vmem:[#allocation2 + $0xb0] sm:$0xff]
    %v88 = vld [vmem:[#allocation2 + $0xb8] sm:$0xff]
    %v89 = vld [vmem:[#allocation2 + $0xc0] sm:$0xff]
    %v90 = vld [vmem:[#allocation2 + $0xc8] sm:$0xff]
    %v91 = vld [vmem:[#allocation2 + $0xd0] sm:$0xff]
    %v92 = vld [vmem:[#allocation2 + $0xd8] sm:$0xff]
    %v93 = vld [vmem:[#allocation2 + $0xe0] sm:$0xff]
    %v94 = vld [vmem:[#allocation2 + $0xe8] sm:$0xff]
    %v95 = vld [vmem:[#allocation2 + $0xf0] sm:$0xff]
    %v96 = vld [vmem:[#allocation2 + $0xf8] sm:$0xff]
    %v97 = vld [vmem:[#allocation2 + $0x100] sm:$0xff]
    %v98 = vld [vmem:[#allocation2 + $0x108] sm:$0xff]
    %v99 = vld [vmem:[#allocation2 + $0x110] sm:$0xff]
    %v100 = vld [vmem:[#allocation2 + $0x118] sm:$0xff]
    %v101 = vld [vmem:[#allocation2 + $0x120] sm:$0xff]
    %v102 = vld [vmem:[#allocation2 + $0x128] sm:$0xff]
    %v103 = vld [vmem:[#allocation2 + $0x130] sm:$0xff]
    %v104 = vld [vmem:[#allocation2 + $0x138] sm:$0xff]
    %v105 = vld [vmem:[#allocation2 + $0x140] sm:$0xff]
    %v106 = vld [vmem:[#allocation2 + $0x148] sm:$0xff]
    %v107 = vld [vmem:[#allocation2 + $0x150] sm:$0xff]
    %v108 = vld [vmem:[#allocation2 + $0x158] sm:$0xff]
    %v109 = vld [vmem:[#allocation2 + $0x160] sm:$0xff]
    %v110 = vld [vmem:[#allocation2 + $0x168] sm:$0xff]
    %v111 = vld [vmem:[#allocation2 + $0x170] sm:$0xff]
    %v112 = vld [vmem:[#allocation2 + $0x178] sm:$0xff]
    %v113 = vld [vmem:[#allocation2 + $0x180] sm:$0xff]
    %v114 = vld [vmem:[#allocation2 + $0x188] sm:$0xff]
    %v115 = vld [vmem:[#allocation2 + $0x190] sm:$0xff]
    %v116 = vld [vmem:[#allocation2 + $0x198] sm:$0xff]
    %v117 = vld [vmem:[#allocation2 + $0x1a0] sm:$0xff]
    %v118 = vld [vmem:[#allocation2 + $0x1a8] sm:$0xff]
    %v119 = vld [vmem:[#allocation2 + $0x1b0] sm:$0xff]
    %v120 = vld [vmem:[#allocation2 + $0x1b8] sm:$0xff]
    %v121 = vld [vmem:[#allocation2 + $0x1c0] sm:$0xff]
    %v122 = vld [vmem:[#allocation2 + $0x1c8] sm:$0xff]
    %v123 = vld [vmem:[#allocation2 + $0x1d0] sm:$0xff]
    %v124 = vld [vmem:[#allocation2 + $0x1d8] sm:$0xff]
    %v125 = vld [vmem:[#allocation2 + $0x1e0] sm:$0xff]
    %v126 = vld [vmem:[#allocation2 + $0x1e8] sm:$0xff]
    %v127 = vld [vmem:[#allocation2 + $0x1f0] sm:$0xff]
    %v128 = vld [vmem:[#allocation2 + $0x1f8] sm:$0xff]
    %v129 = vld [vmem:[#allocation5] sm:$0xff]
    %v130 = vld [vmem:[#allocation5 + $0x8] sm:$0xff]
    %v131 = vld [vmem:[#allocation5 + $0x10] sm:$0xff]
    %v132 = vld [vmem:[#allocation5 + $0x18] sm:$0xff]
    %v133 = vld [vmem:[#allocation5 + $0x20] sm:$0xff]
    %v134 = vld [vmem:[#allocation5 + $0x28] sm:$0xff]
    %v135 = vld [vmem:[#allocation5 + $0x30] sm:$0xff]
    %v136 = vld [vmem:[#allocation5 + $0x38] sm:$0xff]
    %v137 = vld [vmem:[#allocation5 + $0x40] sm:$0xff]
    %v138 = vld [vmem:[#allocation5 + $0x48] sm:$0xff]
    %v139 = vld [vmem:[#allocation5 + $0x50] sm:$0xff]
    %v140 = vld [vmem:[#allocation5 + $0x58] sm:$0xff]
    %v141 = vld [vmem:[#allocation5 + $0x60] sm:$0xff]
    %v142 = vld [vmem:[#allocation5 + $0x68] sm:$0xff]
    %v143 = vld [vmem:[#allocation5 + $0x70] sm:$0xff]
    %v144 = vld [vmem:[#allocation5 + $0x78] sm:$0xff]
    %v145 = vld [vmem:[#allocation5 + $0x80] sm:$0xff]
    %v146 = vld [vmem:[#allocation5 + $0x88] sm:$0xff]
    %v147 = vld [vmem:[#allocation5 + $0x90] sm:$0xff]
    %v148 = vld [vmem:[#allocation5 + $0x98] sm:$0xff]
    %v149 = vld [vmem:[#allocation5 + $0xa0] sm:$0xff]
    %v150 = vld [vmem:[#allocation5 + $0xa8] sm:$0xff]
    %v151 = vld [vmem:[#allocation5 + $0xb0] sm:$0xff]
    %v152 = vld [vmem:[#allocation5 + $0xb8] sm:$0xff]
    %v153 = vld [vmem:[#allocation5 + $0xc0] sm:$0xff]
    %v154 = vld [vmem:[#allocation5 + $0xc8] sm:$0xff]
    %v155 = vld [vmem:[#allocation5 + $0xd0] sm:$0xff]
    %v156 = vld [vmem:[#allocation5 + $0xd8] sm:$0xff]
    %v157 = vld [vmem:[#allocation5 + $0xe0] sm:$0xff]
    %v158 = vld [vmem:[#allocation5 + $0xe8] sm:$0xff]
    %v159 = vld [vmem:[#allocation5 + $0xf0] sm:$0xff]
    %v160 = vld [vmem:[#allocation5 + $0xf8] sm:$0xff]
    %v161 = vld [vmem:[#allocation5 + $0x100] sm:$0xff]
    %v162 = vld [vmem:[#allocation5 + $0x108] sm:$0xff]
    %v163 = vld [vmem:[#allocation5 + $0x110] sm:$0xff]
    %v164 = vld [vmem:[#allocation5 + $0x118] sm:$0xff]
    %v165 = vld [vmem:[#allocation5 + $0x120] sm:$0xff]
    %v166 = vld [vmem:[#allocation5 + $0x128] sm:$0xff]
    %v167 = vld [vmem:[#allocation5 + $0x130] sm:$0xff]
    %v168 = vld [vmem:[#allocation5 + $0x138] sm:$0xff]
    %v169 = vld [vmem:[#allocation5 + $0x140] sm:$0xff]
    %v170 = vld [vmem:[#allocation5 + $0x148] sm:$0xff]
    %v171 = vld [vmem:[#allocation5 + $0x150] sm:$0xff]
    %v172 = vld [vmem:[#allocation5 + $0x158] sm:$0xff]
    %v173 = vld [vmem:[#allocation5 + $0x160] sm:$0xff]
    %v174 = vld [vmem:[#allocation5 + $0x168] sm:$0xff]
    %v175 = vld [vmem:[#allocation5 + $0x170] sm:$0xff]
    %v176 = vld [vmem:[#allocation5 + $0x178] sm:$0xff]
    %v177 = vld [vmem:[#allocation5 + $0x180] sm:$0xff]
    %v178 = vld [vmem:[#allocation5 + $0x188] sm:$0xff]
    %v179 = vld [vmem:[#allocation5 + $0x190] sm:$0xff]
    %v180 = vld [vmem:[#allocation5 + $0x198] sm:$0xff]
    %v181 = vld [vmem:[#allocation5 + $0x1a0] sm:$0xff]
    %v182 = vld [vmem:[#allocation5 + $0x1a8] sm:$0xff]
    %v183 = vld [vmem:[#allocation5 + $0x1b0] sm:$0xff]
    %v184 = vld [vmem:[#allocation5 + $0x1b8] sm:$0xff]
    %v185 = vld [vmem:[#allocation5 + $0x1c0] sm:$0xff]
    %v186 = vld [vmem:[#allocation5 + $0x1c8] sm:$0xff]
    %v187 = vld [vmem:[#allocation5 + $0x1d0] sm:$0xff]
    %v188 = vld [vmem:[#allocation5 + $0x1d8] sm:$0xff]
    %v189 = vld [vmem:[#allocation5 + $0x1e0] sm:$0xff]
    %v190 = vld [vmem:[#allocation5 + $0x1e8] sm:$0xff]
    %v191 = vld [vmem:[#allocation5 + $0x1f0] sm:$0xff]
    %v192 = vld [vmem:[#allocation5 + $0x1f8] sm:$0xff]
    %v193 = vmul.f32 %v129, 0.010416667
    %v194 = vmul.f32 %v130, 0.010416667
    %v195 = vmul.f32 %v131, 0.010416667
    %v196 = vmul.f32 %v132, 0.010416667
    %v197 = vmul.f32 %v133, 0.010416667
    %v198 = vmul.f32 %v134, 0.010416667
    %v199 = vmul.f32 %v135, 0.010416667
    %v200 = vmul.f32 %v136, 0.010416667
    %v201 = vmul.f32 %v137, 0.010416667
    %v202 = vmul.f32 %v138, 0.010416667
    %v203 = vmul.f32 %v139, 0.010416667
    %v204 = vmul.f32 %v140, 0.010416667
    %v205 = vmul.f32 %v141, 0.010416667
    %v206 = vmul.f32 %v142, 0.010416667
    %v207 = vmul.f32 %v143, 0.010416667
    %v208 = vmul.f32 %v144, 0.010416667
    %v209 = vmul.f32 %v145, 0.010416667
    %v210 = vmul.f32 %v146, 0.010416667
    %v211 = vmul.f32 %v147, 0.010416667
    %v212 = vmul.f32 %v148, 0.010416667
    %v213 = vmul.f32 %v149, 0.010416667
    %v214 = vmul.f32 %v150, 0.010416667
    %v215 = vmul.f32 %v151, 0.010416667
    %v216 = vmul.f32 %v152, 0.010416667
    %v217 = vmul.f32 %v153, 0.010416667
    %v218 = vmul.f32 %v154, 0.010416667
    %v219 = vmul.f32 %v155, 0.010416667
    %v220 = vmul.f32 %v156, 0.010416667
    %v221 = vmul.f32 %v157, 0.010416667
    %v222 = vmul.f32 %v158, 0.010416667
    %v223 = vmul.f32 %v159, 0.010416667
    %v224 = vmul.f32 %v160, 0.010416667
    %v225 = vmul.f32 %v161, 0.010416667
    %v226 = vmul.f32 %v162, 0.010416667
    %v227 = vmul.f32 %v163, 0.010416667
    %v228 = vmul.f32 %v164, 0.010416667
    %v229 = vmul.f32 %v165, 0.010416667
    %v230 = vmul.f32 %v166, 0.010416667
    %v231 = vmul.f32 %v167, 0.010416667
    %v232 = vmul.f32 %v168, 0.010416667
    %v233 = vmul.f32 %v169, 0.010416667
    %v234 = vmul.f32 %v170, 0.010416667
    %v235 = vmul.f32 %v171, 0.010416667
    %v236 = vmul.f32 %v172, 0.010416667
    %v237 = vmul.f32 %v173, 0.010416667
    %v238 = vmul.f32 %v174, 0.010416667
    %v239 = vmul.f32 %v175, 0.010416667
    %v240 = vmul.f32 %v176, 0.010416667
    %v241 = vmul.f32 %v177, 0.010416667
    %v242 = vmul.f32 %v178, 0.010416667
    %v243 = vmul.f32 %v179, 0.010416667
    %v244 = vmul.f32 %v180, 0.010416667
    %v245 = vmul.f32 %v181, 0.010416667
    %v246 = vmul.f32 %v182, 0.010416667
    %v247 = vmul.f32 %v183, 0.010416667
    %v248 = vmul.f32 %v184, 0.010416667
    %v249 = vmul.f32 %v185, 0.010416667
    %v250 = vmul.f32 %v186, 0.010416667
    %v251 = vmul.f32 %v187, 0.010416667
    %v252 = vmul.f32 %v188, 0.010416667
    %v253 = vmul.f32 %v189, 0.010416667
    %v254 = vmul.f32 %v190, 0.010416667
    %v255 = vmul.f32 %v191, 0.010416667
    %v256 = vmul.f32 %v192, 0.010416667
    %v257 = vsub.f32 %v193, 1.0
    %v258 = vsub.f32 %v194, 1.0
    %v259 = vsub.f32 %v195, 1.0
    %v260 = vsub.f32 %v196, 1.0
    %v261 = vsub.f32 %v197, 1.0
    %v262 = vsub.f32 %v198, 1.0
    %v263 = vsub.f32 %v199, 1.0
    %v264 = vsub.f32 %v200, 1.0
    %v265 = vsub.f32 %v201, 1.0
    %v266 = vsub.f32 %v202, 1.0
    %v267 = vsub.f32 %v203, 1.0
    %v268 = vsub.f32 %v204, 1.0
    %v269 = vsub.f32 %v205, 1.0
    %v270 = vsub.f32 %v206, 1.0
    %v271 = vsub.f32 %v207, 1.0
    %v272 = vsub.f32 %v208, 1.0
    %v273 = vsub.f32 %v209, 1.0
    %v274 = vsub.f32 %v210, 1.0
    %v275 = vsub.f32 %v211, 1.0
    %v276 = vsub.f32 %v212, 1.0
    %v277 = vsub.f32 %v213, 1.0
    %v278 = vsub.f32 %v214, 1.0
    %v279 = vsub.f32 %v215, 1.0
    %v280 = vsub.f32 %v216, 1.0
    %v281 = vsub.f32 %v217, 1.0
    %v282 = vsub.f32 %v218, 1.0
    %v283 = vsub.f32 %v219, 1.0
    %v284 = vsub.f32 %v220, 1.0
    %v285 = vsub.f32 %v221, 1.0
    %v286 = vsub.f32 %v222, 1.0
    %v287 = vsub.f32 %v223, 1.0
    %v288 = vsub.f32 %v224, 1.0
    %v289 = vsub.f32 %v225, 1.0
    %v290 = vsub.f32 %v226, 1.0
    %v291 = vsub.f32 %v227, 1.0
    %v292 = vsub.f32 %v228, 1.0
    %v293 = vsub.f32 %v229, 1.0
    %v294 = vsub.f32 %v230, 1.0
    %v295 = vsub.f32 %v231, 1.0
    %v296 = vsub.f32 %v232, 1.0
    %v297 = vsub.f32 %v233, 1.0
    %v298 = vsub.f32 %v234, 1.0
    %v299 = vsub.f32 %v235, 1.0
    %v300 = vsub.f32 %v236, 1.0
    %v301 = vsub.f32 %v237, 1.0
    %v302 = vsub.f32 %v238, 1.0
    %v303 = vsub.f32 %v239, 1.0
    %v304 = vsub.f32 %v240, 1.0
    %v305 = vsub.f32 %v241, 1.0
    %v306 = vsub.f32 %v242, 1.0
    %v307 = vsub.f32 %v243, 1.0
    %v308 = vsub.f32 %v244, 1.0
    %v309 = vsub.f32 %v245, 1.0
    %v310 = vsub.f32 %v246, 1.0
    %v311 = vsub.f32 %v247, 1.0
    %v312 = vsub.f32 %v248, 1.0
    %v313 = vsub.f32 %v249, 1.0
    %v314 = vsub.f32 %v250, 1.0
    %v315 = vsub.f32 %v251, 1.0
    %v316 = vsub.f32 %v252, 1.0
    %v317 = vsub.f32 %v253, 1.0
    %v318 = vsub.f32 %v254, 1.0
    %v319 = vsub.f32 %v255, 1.0
    %v320 = vsub.f32 %v256, 1.0
    %v321 = vsub.f32 %v65, %v257
    %v322 = vsub.f32 %v66, %v258
    %v323 = vsub.f32 %v67, %v259
    %v324 = vsub.f32 %v68, %v260
    %v325 = vsub.f32 %v69, %v261
    %v326 = vsub.f32 %v70, %v262
    %v327 = vsub.f32 %v71, %v263
    %v328 = vsub.f32 %v72, %v264
    %v329 = vsub.f32 %v73, %v265
    %v330 = vsub.f32 %v74, %v266
    %v331 = vsub.f32 %v75, %v267
    %v332 = vsub.f32 %v76, %v268
    %v333 = vsub.f32 %v77, %v269
    %v334 = vsub.f32 %v78, %v270
    %v335 = vsub.f32 %v79, %v271
    %v336 = vsub.f32 %v80, %v272
    %v337 = vsub.f32 %v81, %v273
    %v338 = vsub.f32 %v82, %v274
    %v339 = vsub.f32 %v83, %v275
    %v340 = vsub.f32 %v84, %v276
    %v341 = vsub.f32 %v85, %v277
    %v342 = vsub.f32 %v86, %v278
    %v343 = vsub.f32 %v87, %v279
    %v344 = vsub.f32 %v88, %v280
    %v345 = vsub.f32 %v89, %v281
    %v346 = vsub.f32 %v90, %v282
    %v347 = vsub.f32 %v91, %v283
    %v348 = vsub.f32 %v92, %v284
    %v349 = vsub.f32 %v93, %v285
    %v350 = vsub.f32 %v94, %v286
    %v351 = vsub.f32 %v95, %v287
    %v352 = vsub.f32 %v96, %v288
    %v353 = vsub.f32 %v97, %v289
    %v354 = vsub.f32 %v98, %v290
    %v355 = vsub.f32 %v99, %v291
    %v356 = vsub.f32 %v100, %v292
    %v357 = vsub.f32 %v101, %v293
    %v358 = vsub.f32 %v102, %v294
    %v359 = vsub.f32 %v103, %v295
    %v360 = vsub.f32 %v104, %v296
    %v361 = vsub.f32 %v105, %v297
    %v362 = vsub.f32 %v106, %v298
    %v363 = vsub.f32 %v107, %v299
    %v364 = vsub.f32 %v108, %v300
    %v365 = vsub.f32 %v109, %v301
    %v366 = vsub.f32 %v110, %v302
    %v367 = vsub.f32 %v111, %v303
    %v368 = vsub.f32 %v112, %v304
    %v369 = vsub.f32 %v113, %v305
    %v370 = vsub.f32 %v114, %v306
    %v371 = vsub.f32 %v115, %v307
    %v372 = vsub.f32 %v116, %v308
    %v373 = vsub.f32 %v117, %v309
    %v374 = vsub.f32 %v118, %v310
    %v375 = vsub.f32 %v119, %v311
    %v376 = vsub.f32 %v120, %v312
    %v377 = vsub.f32 %v121, %v313
    %v378 = vsub.f32 %v122, %v314
    %v379 = vsub.f32 %v123, %v315
    %v380 = vsub.f32 %v124, %v316
    %v381 = vsub.f32 %v125, %v317
    %v382 = vsub.f32 %v126, %v318
    %v383 = vsub.f32 %v127, %v319
    %v384 = vsub.f32 %v128, %v320
    %v385 = vmul.f32 %v321, %v321
    %v386 = vmul.f32 %v322, %v322
    %v387 = vmul.f32 %v323, %v323
    %v388 = vmul.f32 %v324, %v324
    %v389 = vmul.f32 %v325, %v325
    %v390 = vmul.f32 %v326, %v326
    %v391 = vmul.f32 %v327, %v327
    %v392 = vmul.f32 %v328, %v328
    %v393 = vmul.f32 %v329, %v329
    %v394 = vmul.f32 %v330, %v330
    %v395 = vmul.f32 %v331, %v331
    %v396 = vmul.f32 %v332, %v332
    %v397 = vmul.f32 %v333, %v333
    %v398 = vmul.f32 %v334, %v334
    %v399 = vmul.f32 %v335, %v335
    %v400 = vmul.f32 %v336, %v336
    %v401 = vmul.f32 %v337, %v337
    %v402 = vmul.f32 %v338, %v338
    %v403 = vmul.f32 %v339, %v339
    %v404 = vmul.f32 %v340, %v340
    %v405 = vmul.f32 %v341, %v341
    %v406 = vmul.f32 %v342, %v342
    %v407 = vmul.f32 %v343, %v343
    %v408 = vmul.f32 %v344, %v344
    %v409 = vmul.f32 %v345, %v345
    %v410 = vmul.f32 %v346, %v346
    %v411 = vmul.f32 %v347, %v347
    %v412 = vmul.f32 %v348, %v348
    %v413 = vmul.f32 %v349, %v349
    %v414 = vmul.f32 %v350, %v350
    %v415 = vmul.f32 %v351, %v351
    %v416 = vmul.f32 %v352, %v352
    %v417 = vmul.f32 %v353, %v353
    %v418 = vmul.f32 %v354, %v354
    %v419 = vmul.f32 %v355, %v355
    %v420 = vmul.f32 %v356, %v356
    %v421 = vmul.f32 %v357, %v357
    %v422 = vmul.f32 %v358, %v358
    %v423 = vmul.f32 %v359, %v359
    %v424 = vmul.f32 %v360, %v360
    %v425 = vmul.f32 %v361, %v361
    %v426 = vmul.f32 %v362, %v362
    %v427 = vmul.f32 %v363, %v363
    %v428 = vmul.f32 %v364, %v364
    %v429 = vmul.f32 %v365, %v365
    %v430 = vmul.f32 %v366, %v366
    %v431 = vmul.f32 %v367, %v367
    %v432 = vmul.f32 %v368, %v368
    %v433 = vmul.f32 %v369, %v369
    %v434 = vmul.f32 %v370, %v370
    %v435 = vmul.f32 %v371, %v371
    %v436 = vmul.f32 %v372, %v372
    %v437 = vmul.f32 %v373, %v373
    %v438 = vmul.f32 %v374, %v374
    %v439 = vmul.f32 %v375, %v375
    %v440 = vmul.f32 %v376, %v376
    %v441 = vmul.f32 %v377, %v377
    %v442 = vmul.f32 %v378, %v378
    %v443 = vmul.f32 %v379, %v379
    %v444 = vmul.f32 %v380, %v380
    %v445 = vmul.f32 %v381, %v381
    %v446 = vmul.f32 %v382, %v382
    %v447 = vmul.f32 %v383, %v383
    %v448 = vmul.f32 %v384, %v384
    %s449 = sadd.s32 0, 0
    %s450 = smul.u32 %s449, 512
    %v451 = vlaneseq
    %v452 = vshrl.u32 %v451, 7
    %v453 = vadd.s32 %v452, 8
    %v454 = vadd.s32 %v452, 16
    %v455 = vadd.s32 %v452, 24
    %v456 = vadd.s32 %v452, 32
    %v457 = vadd.s32 %v452, 40
    %v458 = vadd.s32 %v452, 48
    %v459 = vadd.s32 %v452, 56
    %v460 = vadd.s32 %v452, 64
    %v461 = vadd.s32 %v452, 72
    %v462 = vadd.s32 %v452, 80
    %v463 = vadd.s32 %v452, 88
    %v464 = vadd.s32 %v452, 96
    %v465 = vadd.s32 %v452, 104
    %v466 = vadd.s32 %v452, 112
    %v467 = vadd.s32 %v452, 120
    %v468 = vadd.s32 %v452, 128
    %v469 = vadd.s32 %v452, 136
    %v470 = vadd.s32 %v452, 144
    %v471 = vadd.s32 %v452, 152
    %v472 = vadd.s32 %v452, 160
    %v473 = vadd.s32 %v452, 168
    %v474 = vadd.s32 %v452, 176
    %v475 = vadd.s32 %v452, 184
    %v476 = vadd.s32 %v452, 192
    %v477 = vadd.s32 %v452, 200
    %v478 = vadd.s32 %v452, 208
    %v479 = vadd.s32 %v452, 216
    %v480 = vadd.s32 %v452, 224
    %v481 = vadd.s32 %v452, 232
    %v482 = vadd.s32 %v452, 240
    %v483 = vadd.s32 %v452, 248
    %v484 = vadd.s32 %v452, 256
    %v485 = vadd.s32 %v452, 264
    %v486 = vadd.s32 %v452, 272
    %v487 = vadd.s32 %v452, 280
    %v488 = vadd.s32 %v452, 288
    %v489 = vadd.s32 %v452, 296
    %v490 = vadd.s32 %v452, 304
    %v491 = vadd.s32 %v452, 312
    %v492 = vadd.s32 %v452, 320
    %v493 = vadd.s32 %v452, 328
    %v494 = vadd.s32 %v452, 336
    %v495 = vadd.s32 %v452, 344
    %v496 = vadd.s32 %v452, 352
    %v497 = vadd.s32 %v452, 360
    %v498 = vadd.s32 %v452, 368
    %v499 = vadd.s32 %v452, 376
    %v500 = vadd.s32 %v452, 384
    %v501 = vadd.s32 %v452, 392
    %v502 = vadd.s32 %v452, 400
    %v503 = vadd.s32 %v452, 408
    %v504 = vadd.s32 %v452, 416
    %v505 = vadd.s32 %v452, 424
    %v506 = vadd.s32 %v452, 432
    %v507 = vadd.s32 %v452, 440
    %v508 = vadd.s32 %v452, 448
    %v509 = vadd.s32 %v452, 456
    %v510 = vadd.s32 %v452, 464
    %v511 = vadd.s32 %v452, 472
    %v512 = vadd.s32 %v452, 480
    %v513 = vadd.s32 %v452, 488
    %v514 = vadd.s32 %v452, 496
    %v515 = vadd.s32 %v452, 504
    %s516 = ssub.s32 512, %s450
    %v517 = vstv %s516
    %vm518 = vcmp.lt.s32.totalorder %v452, %v517
    %vm519 = vcmp.lt.s32.totalorder %v453, %v517
    %vm520 = vcmp.lt.s32.totalorder %v454, %v517
    %vm521 = vcmp.lt.s32.totalorder %v455, %v517
    %vm522 = vcmp.lt.s32.totalorder %v456, %v517
    %vm523 = vcmp.lt.s32.totalorder %v457, %v517
    %vm524 = vcmp.lt.s32.totalorder %v458, %v517
    %vm525 = vcmp.lt.s32.totalorder %v459, %v517
    %vm526 = vcmp.lt.s32.totalorder %v460, %v517
    %vm527 = vcmp.lt.s32.totalorder %v461, %v517
    %vm528 = vcmp.lt.s32.totalorder %v462, %v517
    %vm529 = vcmp.lt.s32.totalorder %v463, %v517
    %vm530 = vcmp.lt.s32.totalorder %v464, %v517
    %vm531 = vcmp.lt.s32.totalorder %v465, %v517
    %vm532 = vcmp.lt.s32.totalorder %v466, %v517
    %vm533 = vcmp.lt.s32.totalorder %v467, %v517
    %vm534 = vcmp.lt.s32.totalorder %v468, %v517
    %vm535 = vcmp.lt.s32.totalorder %v469, %v517
    %vm536 = vcmp.lt.s32.totalorder %v470, %v517
    %vm537 = vcmp.lt.s32.totalorder %v471, %v517
    %vm538 = vcmp.lt.s32.totalorder %v472, %v517
    %vm539 = vcmp.lt.s32.totalorder %v473, %v517
    %vm540 = vcmp.lt.s32.totalorder %v474, %v517
    %vm541 = vcmp.lt.s32.totalorder %v475, %v517
    %vm542 = vcmp.lt.s32.totalorder %v476, %v517
    %vm543 = vcmp.lt.s32.totalorder %v477, %v517
    %vm544 = vcmp.lt.s32.totalorder %v478, %v517
    %vm545 = vcmp.lt.s32.totalorder %v479, %v517
    %vm546 = vcmp.lt.s32.totalorder %v480, %v517
    %vm547 = vcmp.lt.s32.totalorder %v481, %v517
    %vm548 = vcmp.lt.s32.totalorder %v482, %v517
    %vm549 = vcmp.lt.s32.totalorder %v483, %v517
    %vm550 = vcmp.lt.s32.totalorder %v484, %v517
    %vm551 = vcmp.lt.s32.totalorder %v485, %v517
    %vm552 = vcmp.lt.s32.totalorder %v486, %v517
    %vm553 = vcmp.lt.s32.totalorder %v487, %v517
    %vm554 = vcmp.lt.s32.totalorder %v488, %v517
    %vm555 = vcmp.lt.s32.totalorder %v489, %v517
    %vm556 = vcmp.lt.s32.totalorder %v490, %v517
    %vm557 = vcmp.lt.s32.totalorder %v491, %v517
    %vm558 = vcmp.lt.s32.totalorder %v492, %v517
    %vm559 = vcmp.lt.s32.totalorder %v493, %v517
    %vm560 = vcmp.lt.s32.totalorder %v494, %v517
    %vm561 = vcmp.lt.s32.totalorder %v495, %v517
    %vm562 = vcmp.lt.s32.totalorder %v496, %v517
    %vm563 = vcmp.lt.s32.totalorder %v497, %v517
    %vm564 = vcmp.lt.s32.totalorder %v498, %v517
    %vm565 = vcmp.lt.s32.totalorder %v499, %v517
    %vm566 = vcmp.lt.s32.totalorder %v500, %v517
    %vm567 = vcmp.lt.s32.totalorder %v501, %v517
    %vm568 = vcmp.lt.s32.totalorder %v502, %v517
    %vm569 = vcmp.lt.s32.totalorder %v503, %v517
    %vm570 = vcmp.lt.s32.totalorder %v504, %v517
    %vm571 = vcmp.lt.s32.totalorder %v505, %v517
    %vm572 = vcmp.lt.s32.totalorder %v506, %v517
    %vm573 = vcmp.lt.s32.totalorder %v507, %v517
    %vm574 = vcmp.lt.s32.totalorder %v508, %v517
    %vm575 = vcmp.lt.s32.totalorder %v509, %v517
    %vm576 = vcmp.lt.s32.totalorder %v510, %v517
    %vm577 = vcmp.lt.s32.totalorder %v511, %v517
    %vm578 = vcmp.lt.s32.totalorder %v512, %v517
    %vm579 = vcmp.lt.s32.totalorder %v513, %v517
    %vm580 = vcmp.lt.s32.totalorder %v514, %v517
    %vm581 = vcmp.lt.s32.totalorder %v515, %v517
    %v582 = vsel %vm518, %v385, 0.0
    %v583 = vsel %vm519, %v386, 0.0
    %v584 = vsel %vm520, %v387, 0.0
    %v585 = vsel %vm521, %v388, 0.0
    %v586 = vsel %vm522, %v389, 0.0
    %v587 = vsel %vm523, %v390, 0.0
    %v588 = vsel %vm524, %v391, 0.0
    %v589 = vsel %vm525, %v392, 0.0
    %v590 = vsel %vm526, %v393, 0.0
    %v591 = vsel %vm527, %v394, 0.0
    %v592 = vsel %vm528, %v395, 0.0
    %v593 = vsel %vm529, %v396, 0.0
    %v594 = vsel %vm530, %v397, 0.0
    %v595 = vsel %vm531, %v398, 0.0
    %v596 = vsel %vm532, %v399, 0.0
    %v597 = vsel %vm533, %v400, 0.0
    %v598 = vsel %vm534, %v401, 0.0
    %v599 = vsel %vm535, %v402, 0.0
    %v600 = vsel %vm536, %v403, 0.0
    %v601 = vsel %vm537, %v404, 0.0
    %v602 = vsel %vm538, %v405, 0.0
    %v603 = vsel %vm539, %v406, 0.0
    %v604 = vsel %vm540, %v407, 0.0
    %v605 = vsel %vm541, %v408, 0.0
    %v606 = vsel %vm542, %v409, 0.0
    %v607 = vsel %vm543, %v410, 0.0
    %v608 = vsel %vm544, %v411, 0.0
    %v609 = vsel %vm545, %v412, 0.0
    %v610 = vsel %vm546, %v413, 0.0
    %v611 = vsel %vm547, %v414, 0.0
    %v612 = vsel %vm548, %v415, 0.0
    %v613 = vsel %vm549, %v416, 0.0
    %v614 = vsel %vm550, %v417, 0.0
    %v615 = vsel %vm551, %v418, 0.0
    %v616 = vsel %vm552, %v419, 0.0
    %v617 = vsel %vm553, %v420, 0.0
    %v618 = vsel %vm554, %v421, 0.0
    %v619 = vsel %vm555, %v422, 0.0
    %v620 = vsel %vm556, %v423, 0.0
    %v621 = vsel %vm557, %v424, 0.0
    %v622 = vsel %vm558, %v425, 0.0
    %v623 = vsel %vm559, %v426, 0.0
    %v624 = vsel %vm560, %v427, 0.0
    %v625 = vsel %vm561, %v428, 0.0
    %v626 = vsel %vm562, %v429, 0.0
    %v627 = vsel %vm563, %v430, 0.0
    %v628 = vsel %vm564, %v431, 0.0
    %v629 = vsel %vm565, %v432, 0.0
    %v630 = vsel %vm566, %v433, 0.0
    %v631 = vsel %vm567, %v434, 0.0
    %v632 = vsel %vm568, %v435, 0.0
    %v633 = vsel %vm569, %v436, 0.0
    %v634 = vsel %vm570, %v437, 0.0
    %v635 = vsel %vm571, %v438, 0.0
    %v636 = vsel %vm572, %v439, 0.0
    %v637 = vsel %vm573, %v440, 0.0
    %v638 = vsel %vm574, %v441, 0.0
    %v639 = vsel %vm575, %v442, 0.0
    %v640 = vsel %vm576, %v443, 0.0
    %v641 = vsel %vm577, %v444, 0.0
    %v642 = vsel %vm578, %v445, 0.0
    %v643 = vsel %vm579, %v446, 0.0
    %v644 = vsel %vm580, %v447, 0.0
    %v645 = vsel %vm581, %v448, 0.0
    %v646 = vld [vmem:[#allocation7] sm:$0xff]
    %v647 = vadd.f32 %v582, %v583
    %v648 = vadd.f32 %v647, %v584
    %v649 = vadd.f32 %v648, %v585
    %v650 = vadd.f32 %v649, %v586
    %v651 = vadd.f32 %v650, %v587
    %v652 = vadd.f32 %v651, %v588
    %v653 = vadd.f32 %v652, %v589
    %v654 = vadd.f32 %v653, %v590
    %v655 = vadd.f32 %v654, %v591
    %v656 = vadd.f32 %v655, %v592
    %v657 = vadd.f32 %v656, %v593
    %v658 = vadd.f32 %v657, %v594
    %v659 = vadd.f32 %v658, %v595
    %v660 = vadd.f32 %v659, %v596
    %v661 = vadd.f32 %v660, %v597
    %v662 = vadd.f32 %v661, %v598
    %v663 = vadd.f32 %v662, %v599
    %v664 = vadd.f32 %v663, %v600
    %v665 = vadd.f32 %v664, %v601
    %v666 = vadd.f32 %v665, %v602
    %v667 = vadd.f32 %v666, %v603
    %v668 = vadd.f32 %v667, %v604
    %v669 = vadd.f32 %v668, %v605
    %v670 = vadd.f32 %v669, %v606
    %v671 = vadd.f32 %v670, %v607
    %v672 = vadd.f32 %v671, %v608
    %v673 = vadd.f32 %v672, %v609
    %v674 = vadd.f32 %v673, %v610
    %v675 = vadd.f32 %v674, %v611
    %v676 = vadd.f32 %v675, %v612
    %v677 = vadd.f32 %v676, %v613
    %v678 = vadd.f32 %v677, %v614
    %v679 = vadd.f32 %v678, %v615
    %v680 = vadd.f32 %v679, %v616
    %v681 = vadd.f32 %v680, %v617
    %v682 = vadd.f32 %v681, %v618
    %v683 = vadd.f32 %v682, %v619
    %v684 = vadd.f32 %v683, %v620
    %v685 = vadd.f32 %v684, %v621
    %v686 = vadd.f32 %v685, %v622
    %v687 = vadd.f32 %v686, %v623
    %v688 = vadd.f32 %v687, %v624
    %v689 = vadd.f32 %v688, %v625
    %v690 = vadd.f32 %v689, %v626
    %v691 = vadd.f32 %v690, %v627
    %v692 = vadd.f32 %v691, %v628
    %v693 = vadd.f32 %v692, %v629
    %v694 = vadd.f32 %v693, %v630
    %v695 = vadd.f32 %v694, %v631
    %v696 = vadd.f32 %v695, %v632
    %v697 = vadd.f32 %v696, %v633
    %v698 = vadd.f32 %v697, %v634
    %v699 = vadd.f32 %v698, %v635
    %v700 = vadd.f32 %v699, %v636
    %v701 = vadd.f32 %v700, %v637
    %v702 = vadd.f32 %v701, %v638
    %v703 = vadd.f32 %v702, %v639
    %v704 = vadd.f32 %v703, %v640
    %v705 = vadd.f32 %v704, %v641
    %v706 = vadd.f32 %v705, %v642
    %v707 = vadd.f32 %v706, %v643
    %v708 = vadd.f32 %v707, %v644
    %v709 = vadd.f32 %v708, %v645
    %v710 = vadd.f32 %v646, %v709
    %711 = vst [vmem:[#allocation7] sm:$0xff] %v710
    // Predicated region
    $region22: #{tpu_custom_call.1} parent=1 // pred_check
      _
    $region23: #{tpu_custom_call.1} parent=1 // pred_check_branch
      %713 = sbr.rel (0) target = $region25
    $region24: #{tpu_custom_call.1} parent=1 // pred_region
      %s715 = ssub.s32 128, 128
      %716 = vsyncadd [#allocation4], %s715
      %s718 = sshll.u32 [#allocation7], 4
      %s719 = int_to_ptr.vmem [resolvable:$true] %s718
      %721 = dma.vmem_to_hbm [thread:$0]  %s719, 128, %s2, [#allocation4]
    $region25: #{tpu_custom_call.1} parent=1 // pred_fallthru
      _
    // Predicated region
    $region26: #{tpu_custom_call.1} parent=1 // pred_check
      _
    $region27: #{tpu_custom_call.1} parent=1 // pred_check_branch
      %723 = sbr.rel (0) target = $region29
    $region28: #{tpu_custom_call.1} parent=1 // pred_region
      %724 = dma.done [#allocation4], 128
    $region29: #{tpu_custom_call.1} parent=1 // pred_fallthru
      _
    %725 = vsyncpa [#allocation3], 1
    %726 = vsyncpa [#allocation6], 1
    %727 = vsyncpa [#allocation4], 1

</llo_original>
